<compile_context>
chip_gen: v5e
topology: v5e:2x2
jax: 0.10.0
libtpu: 0.0.40
codegen_flags: <defaults>
</compile_context>

<pallas_src>
import jax
import jax.numpy as jnp
import numpy as np
from jax.experimental import pallas as pl
from jax.experimental.pallas import tpu as pltpu


def _round_up(n, m):
    return ((n + m - 1) // m) * m


def _choose_batch_tiling(B, tb_cap=512):
    """Pick (tile_rows, num_tiles).

    * tiles are multiples of 16 rows (bf16 sublane packing; also covers the
      (8, 128) block rule on the second-minor axis),
    * tile_rows <= tb_cap (small tiles => more grid steps => pipelining and
      balanced dual-TC sharding on v7x; VMEM stays tiny),
    * num_tiles is the smallest EVEN count that satisfies the cap (balanced
      split across v7x's two TensorCores), with minimal padding,
    * tiny batches fall back to a single tile (splitting 8 rows is pointless).
    """
    if B <= 2 * 128:
        return _round_up(max(B, 16), 16), 1
    n = 2
    while -(-B // n) > tb_cap:          # cdiv
        n += 2
    tb = _round_up(-(-B // n), 16)
    return tb, n


def _discriminator_kernel(x_ref, w1t_ref, b1_ref, w2t_ref, b2_ref,
                          w3_ref, b3_ref, o_ref):
    """One batch tile, batch-major, weights stationary.

    x_ref   : (TB, K)   bf16   pre-concatenated [x ; one_hot(labels)]
    w1t_ref : (K, H1)   bf16   layer-1 weight, (in, out) layout
    b1_ref  : (1, H1)   f32
    w2t_ref : (H1, H2)  bf16
    b2_ref  : (1, H2)   f32
    w3_ref  : (1, H2)   f32    layer-3 weight row (used on the VPU, not MXU)
    b3_ref  : (1,)      f32    SMEM scalar
    o_ref   : (TB, 1)   f32    sigmoid outputs
    """
    # ---- layer 1: (TB, K) @ (K, H1), weights stationary on the MXU ----
    h1 = jnp.dot(x_ref[...], w1t_ref[...],
                 preferred_element_type=jnp.float32)            # (TB, H1) f32
    h1 = h1 + b1_ref[...]
    h1 = jnp.where(h1 > 0, h1, 0.2 * h1)                        # LeakyReLU(0.2)

    # ---- layer 2 ----
    h2 = jnp.dot(h1.astype(jnp.bfloat16), w2t_ref[...],
                 preferred_element_type=jnp.float32)            # (TB, H2) f32
    h2 = h2 + b2_ref[...]
    h2 = jnp.where(h2 > 0, h2, 0.2 * h2)

    # ---- layer 3 (N = 1): VPU multiply + lane reduction, then sigmoid ----
    h3 = jnp.sum(h2 * w3_ref[...], axis=1, keepdims=True) + b3_ref[0]
    o_ref[...] = jax.nn.sigmoid(h3)                             # (TB, 1) f32


def discriminator_forward(x, labels, params, num_classes, *, tb_cap=512):
    """x: (B, input_dim) f32, labels: (B,) int. Returns (B, 1) f32."""
    w1t, b1, w2t, b2, w3, b3 = params
    B, din = x.shape
    K = w1t.shape[0]
    hid1 = w1t.shape[1]
    hid2 = w2t.shape[1]
    assert K == din + num_classes

    # Fuse one_hot + concat + bf16 cast into a single small pre-pass: the
    # kernel then reads ~40 B/row and does ONE layer-1 matmul.
    onehot = jax.nn.one_hot(labels, num_classes, dtype=x.dtype)
    x_cat = jnp.concatenate([x, onehot], axis=1).astype(jnp.bfloat16)  # (B, K)

    tb, num_tiles = _choose_batch_tiling(B, tb_cap)
    b_pad = tb * num_tiles
    if b_pad != B:
        x_cat = jnp.pad(x_cat, ((0, b_pad - B), (0, 0)))

    grid_spec = pltpu.PrefetchScalarGridSpec(
        num_scalar_prefetch=0,
        grid=(num_tiles,),
        in_specs=[
            pl.BlockSpec((tb, K), lambda i: (i, 0)),              # x_cat tile
            pl.BlockSpec((K, hid1), lambda i: (0, 0)),            # W1_T (resident)
            pl.BlockSpec((1, hid1), lambda i: (0, 0)),            # b1
            pl.BlockSpec((hid1, hid2), lambda i: (0, 0)),         # W2_T (resident)
            pl.BlockSpec((1, hid2), lambda i: (0, 0)),            # b2
            pl.BlockSpec((1, hid2), lambda i: (0, 0)),            # w3 row
            pl.BlockSpec(memory_space=pltpu.MemorySpace.SMEM),    # b3 scalar
        ],
        out_specs=pl.BlockSpec((tb, 1), lambda i: (i, 0)),
    )

    out = pl.pallas_call(
        _discriminator_kernel,
        out_shape=jax.ShapeDtypeStruct((b_pad, 1), jnp.float32),
        grid_spec=grid_spec,
        compiler_params=pltpu.CompilerParams(
            dimension_semantics=("parallel",)),
    )(x_cat, w1t, b1, w2t, b2, w3, b3)

    return out[:B]                                               # (B, 1)


def init_params(key, input_dim, num_classes):
    """nn.Linear-style init (uniform +/- 1/sqrt(fan_in)).  Weights are stored
    pre-transposed to (in, out) so the kernel consumes them as the stationary
    MXU RHS without any in-kernel transpose.  Matmul weights bf16, everything
    touched by the f32 epilogue (biases, w3 row) stays f32."""
    d = input_dim + num_classes
    dims = [(d, 64), (64, 32), (32, 1)]
    keys = jax.random.split(key, 2 * len(dims))
    ws, bs = [], []
    for i, (fin, fout) in enumerate(dims):
        bound = 1.0 / np.sqrt(fin)
        ws.append(jax.random.uniform(keys[2 * i], (fout, fin), jnp.float32, -bound, bound))
        bs.append(jax.random.uniform(keys[2 * i + 1], (fout,), jnp.float32, -bound, bound))
    w1, w2, w3 = ws
    b1, b2, b3 = bs
    return (w1.T.astype(jnp.bfloat16),      # (d, 64)
            b1.reshape(1, -1),              # (1, 64) f32
            w2.T.astype(jnp.bfloat16),      # (64, 32)
            b2.reshape(1, -1),              # (1, 32) f32
            w3,                             # (1, 32) f32 (VPU layer-3 row)
            b3)                             # (1,)    f32


def _reference_forward(x, labels, params, num_classes):
    """Pure-f32 JAX reference matching the PyTorch module semantics."""
    w1t, b1, w2t, b2, w3, b3 = params
    hp = jax.lax.Precision.HIGHEST
    onehot = jax.nn.one_hot(labels, num_classes, dtype=jnp.float32)
    xin = jnp.concatenate([x, onehot], axis=1)
    h = jnp.dot(xin, w1t.astype(jnp.float32), precision=hp) + b1
    h = jnp.where(h > 0, h, 0.2 * h)
    h = jnp.dot(h, w2t.astype(jnp.float32), precision=hp) + b2
    h = jnp.where(h > 0, h, 0.2 * h)
    h = jnp.dot(h, w3.astype(jnp.float32).T, precision=hp) + b3
    return jax.nn.sigmoid(h)


if __name__ == "__main__":
    input_dim = 16
    num_classes = 4

    key = jax.random.PRNGKey(0)
    k_x, k_lbl, k_params, k_x2, k_lbl2 = jax.random.split(key, 5)
    params = init_params(k_params, input_dim, num_classes)

    # Small single-tile case (B = 8).
    batch = 8
    x = jax.random.normal(k_x, (batch, input_dim), dtype=jnp.float32)
    labels = jax.random.randint(k_lbl, (batch,), 0, num_classes, dtype=jnp.int32)
    out = jax.block_until_ready(discriminator_forward(x, labels, params, num_classes))
    ref = _reference_forward(x, labels, params, num_classes)
    assert out.shape == (batch, 1)
    np.testing.assert_allclose(np.asarray(out), np.asarray(ref), rtol=2e-2, atol=2e-2)

    # Multi-tile ragged case: B = 4100 -> 10 tiles of 416 rows (even tile
    # count for dual-TC sharding, ~1.5% padding), exercises the pipelined
    # "parallel" batch grid.
    batch2 = 4100
    x2 = jax.random.normal(k_x2, (batch2, input_dim), dtype=jnp.float32)
    labels2 = jax.random.randint(k_lbl2, (batch2,), 0, num_classes, dtype=jnp.int32)
    out2 = jax.block_until_ready(discriminator_forward(x2, labels2, params, num_classes))
    ref2 = _reference_forward(x2, labels2, params, num_classes)
    assert out2.shape == (batch2, 1)
    np.testing.assert_allclose(np.asarray(out2), np.asarray(ref2), rtol=2e-2, atol=2e-2)

    print("KERNEL_OK")
</pallas_src>

<mosaic_0001>
module attributes {stable_mosaic.version = 11 : i64} {
  func.func @_discriminator_kernel(%arg0: i32, %arg1: memref<16x20xbf16, #tpu.memory_space<vmem>>, %arg2: memref<20x64xbf16, #tpu.memory_space<vmem>>, %arg3: memref<1x64xf32, #tpu.memory_space<vmem>>, %arg4: memref<64x32xbf16, #tpu.memory_space<vmem>>, %arg5: memref<1x32xf32, #tpu.memory_space<vmem>>, %arg6: memref<1x32xf32, #tpu.memory_space<vmem>>, %arg7: memref<1xf32, #tpu.memory_space<smem>>, %arg8: memref<16x1xf32, #tpu.memory_space<vmem>>) attributes {dimension_semantics = [#tpu.dimension_semantics<parallel>], iteration_bounds = array<i64: 1>, scalar_prefetch = 0 : i64, scratch_operands = 0 : i64, tpu.core_type = #tpu.core_type<tc>, window_params = [{transform_indices = @transform_0, window_bounds = array<i64: 16, 20>}, {pipeline_mode = #tpu.pipeline_mode<synchronous>, transform_indices = @transform_1, window_bounds = array<i64: 20, 64>}, {pipeline_mode = #tpu.pipeline_mode<synchronous>, transform_indices = @transform_2, window_bounds = array<i64: 1, 64>}, {pipeline_mode = #tpu.pipeline_mode<synchronous>, transform_indices = @transform_3, window_bounds = array<i64: 64, 32>}, {pipeline_mode = #tpu.pipeline_mode<synchronous>, transform_indices = @transform_4, window_bounds = array<i64: 1, 32>}, {pipeline_mode = #tpu.pipeline_mode<synchronous>, transform_indices = @transform_5, window_bounds = array<i64: 1, 32>}, {transform_indices = @transform_6, window_bounds = array<i64: 1>}, {transform_indices = @transform_7, window_bounds = array<i64: 16, 1>}]} {
    %c0 = arith.constant 0 : index
    %c0_0 = arith.constant 0 : index
    %0 = vector.load %arg1[%c0, %c0_0] : memref<16x20xbf16, #tpu.memory_space<vmem>>, vector<16x20xbf16>
    %c0_1 = arith.constant 0 : index
    %c0_2 = arith.constant 0 : index
    %1 = vector.load %arg2[%c0_1, %c0_2] : memref<20x64xbf16, #tpu.memory_space<vmem>>, vector<20x64xbf16>
    %cst = arith.constant dense<0.000000e+00> : vector<16x64xf32>
    %2 = tpu.matmul %0, %1, %cst {dimension_numbers = #tpu.dot_dimension_numbers<[1], [0], [0], [1], [0, 0, 1, 1], [], []>} : vector<16x20xbf16>, vector<20x64xbf16>, vector<16x64xf32> -> vector<16x64xf32>
    %c0_3 = arith.constant 0 : index
    %c0_4 = arith.constant 0 : index
    %3 = vector.load %arg3[%c0_3, %c0_4] : memref<1x64xf32, #tpu.memory_space<vmem>>, vector<1x64xf32>
    %4 = vector.broadcast %3 : vector<1x64xf32> to vector<16x64xf32>
    %5 = arith.addf %2, %4 : vector<16x64xf32>
    %cst_5 = arith.constant 0.000000e+00 : f32
    %6 = vector.broadcast %cst_5 : f32 to vector<16x64xf32>
    %7 = arith.cmpf ogt, %5, %6 : vector<16x64xf32>
    %cst_6 = arith.constant 2.000000e-01 : f32
    %8 = vector.broadcast %cst_6 : f32 to vector<16x64xf32>
    %9 = arith.mulf %8, %5 : vector<16x64xf32>
    %10 = arith.select %7, %5, %9 : vector<16x64xi1>, vector<16x64xf32>
    %11 = arith.truncf %10 : vector<16x64xf32> to vector<16x64xbf16>
    %c0_7 = arith.constant 0 : index
    %c0_8 = arith.constant 0 : index
    %12 = vector.load %arg4[%c0_7, %c0_8] : memref<64x32xbf16, #tpu.memory_space<vmem>>, vector<64x32xbf16>
    %cst_9 = arith.constant dense<0.000000e+00> : vector<16x32xf32>
    %13 = tpu.matmul %11, %12, %cst_9 {dimension_numbers = #tpu.dot_dimension_numbers<[1], [0], [0], [1], [0, 0, 1, 1], [], []>} : vector<16x64xbf16>, vector<64x32xbf16>, vector<16x32xf32> -> vector<16x32xf32>
    %c0_10 = arith.constant 0 : index
    %c0_11 = arith.constant 0 : index
    %14 = vector.load %arg5[%c0_10, %c0_11] : memref<1x32xf32, #tpu.memory_space<vmem>>, vector<1x32xf32>
    %15 = vector.broadcast %14 : vector<1x32xf32> to vector<16x32xf32>
    %16 = arith.addf %13, %15 : vector<16x32xf32>
    %cst_12 = arith.constant 0.000000e+00 : f32
    %17 = vector.broadcast %cst_12 : f32 to vector<16x32xf32>
    %18 = arith.cmpf ogt, %16, %17 : vector<16x32xf32>
    %cst_13 = arith.constant 2.000000e-01 : f32
    %19 = vector.broadcast %cst_13 : f32 to vector<16x32xf32>
    %20 = arith.mulf %19, %16 : vector<16x32xf32>
    %21 = arith.select %18, %16, %20 : vector<16x32xi1>, vector<16x32xf32>
    %c0_14 = arith.constant 0 : index
    %c0_15 = arith.constant 0 : index
    %22 = vector.load %arg6[%c0_14, %c0_15] : memref<1x32xf32, #tpu.memory_space<vmem>>, vector<1x32xf32>
    %23 = vector.broadcast %22 : vector<1x32xf32> to vector<16x32xf32>
    %24 = arith.mulf %21, %23 : vector<16x32xf32>
    %cst_16 = arith.constant dense<0.000000e+00> : vector<16xf32>
    %25 = vector.multi_reduction <add>, %24, %cst_16 [1] : vector<16x32xf32> to vector<16xf32>
    %26 = vector.shape_cast %25 : vector<16xf32> to vector<16x1xf32>
    %c0_17 = arith.constant 0 : index
    %27 = memref.load %arg7[%c0_17] : memref<1xf32, #tpu.memory_space<smem>>
    %28 = vector.broadcast %27 : f32 to vector<16x1xf32>
    %29 = arith.addf %26, %28 : vector<16x1xf32>
    %30 = arith.negf %29 : vector<16x1xf32>
    %31 = math.exp %30 : vector<16x1xf32>
    %cst_18 = arith.constant 1.000000e+00 : f32
    %32 = vector.broadcast %cst_18 : f32 to vector<16x1xf32>
    %33 = arith.addf %32, %31 : vector<16x1xf32>
    %34 = arith.divf %32, %33 : vector<16x1xf32>
    %c0_19 = arith.constant 0 : index
    %c0_20 = arith.constant 0 : index
    %35 = vector.load %arg8[%c0_19, %c0_20] : memref<16x1xf32, #tpu.memory_space<vmem>>, vector<16x1xf32>
    tpu.vector_store %arg8[%c0_19, %c0_20], %34 {strides = array<i32>} : memref<16x1xf32, #tpu.memory_space<vmem>>, vector<16x1xf32>,
    return
  }
  func.func @transform_0(%arg0: i32) -> (i32, i32) {
    %c0_i32 = arith.constant 0 : i32
    %c0_i32_0 = arith.constant 0 : i32
    return %arg0, %c0_i32 : i32, i32
  }
  func.func @transform_1(%arg0: i32) -> (i32, i32) {
    %c0_i32 = arith.constant 0 : i32
    %c0_i32_0 = arith.constant 0 : i32
    %c0_i32_1 = arith.constant 0 : i32
    return %c0_i32, %c0_i32_0 : i32, i32
  }
  func.func @transform_2(%arg0: i32) -> (i32, i32) {
    %c0_i32 = arith.constant 0 : i32
    %c0_i32_0 = arith.constant 0 : i32
    %c0_i32_1 = arith.constant 0 : i32
    return %c0_i32, %c0_i32_0 : i32, i32
  }
  func.func @transform_3(%arg0: i32) -> (i32, i32) {
    %c0_i32 = arith.constant 0 : i32
    %c0_i32_0 = arith.constant 0 : i32
    %c0_i32_1 = arith.constant 0 : i32
    return %c0_i32, %c0_i32_0 : i32, i32
  }
  func.func @transform_4(%arg0: i32) -> (i32, i32) {
    %c0_i32 = arith.constant 0 : i32
    %c0_i32_0 = arith.constant 0 : i32
    %c0_i32_1 = arith.constant 0 : i32
    return %c0_i32, %c0_i32_0 : i32, i32
  }
  func.func @transform_5(%arg0: i32) -> (i32, i32) {
    %c0_i32 = arith.constant 0 : i32
    %c0_i32_0 = arith.constant 0 : i32
    %c0_i32_1 = arith.constant 0 : i32
    return %c0_i32, %c0_i32_0 : i32, i32
  }
  func.func @transform_6(%arg0: i32) -> i32 {
    %c0_i32 = arith.constant 0 : i32
    %c0_i32_0 = arith.constant 0 : i32
    return %c0_i32 : i32
  }
  func.func @transform_7(%arg0: i32) -> (i32, i32) {
    %c0_i32 = arith.constant 0 : i32
    %c0_i32_0 = arith.constant 0 : i32
    return %arg0, %c0_i32 : i32, i32
  }
}

</mosaic_0001>

<llo_original>
// kernel: tpu_custom_call.1
$region0: #{tpu_custom_call.1}
  #allocation0 [shape = 'u32[]', space=smem, size = 0x4, offset = 0x4, fixed_abs, tag = 'smem constant byte address 0x4 - core index']
  #allocation1 [shape = 'u32[72,128]{1,0:T(1,128)}', space=vmem, size = 0x9000, scoped, tag = 'internal scratch']
  #allocation2 [shape = 'f32[1]{0:T(128)S(6)}', space=smem, size = 0x200, scoped, tag = 'scoped memory for tpu_custom_call.1']
  %s0 = inlined_call_operand.vmem [shape: bf16[16,20], index: 0, kind: input, shape index: {}]
  %s1 = inlined_call_operand.vmem [shape: bf16[20,64], index: 1, kind: input, shape index: {}]
  %s2 = inlined_call_operand.vmem [shape: f32[1,64], index: 2, kind: input, shape index: {}]
  %s3 = inlined_call_operand.vmem [shape: bf16[64,32], index: 3, kind: input, shape index: {}]
  %s4 = inlined_call_operand.vmem [shape: f32[1,32], index: 4, kind: input, shape index: {}]
  %s5 = inlined_call_operand.vmem [shape: f32[1,32], index: 5, kind: input, shape index: {}]
  %s6 = inlined_call_operand.<no memory space> [shape: f32[1], index: 6, kind: input, shape index: {}]
  %s7 = inlined_call_operand.vmem [shape: f32[16,1], index: 7, kind: output, shape index: {}]
  %s8 = sld [smem:[#allocation0]]
  $region38: #{tpu_custom_call.1} parent=0
    _
  %s10 = ssub.s32 1, %s8
  %s11 = scalar_select 0, %s10, %s8
  %12 = sst [smem:[#allocation2]] %s6
  // Predicated region
  $region2: #{tpu_custom_call.1} parent=0 // pred_check
    _
  $region3: #{tpu_custom_call.1} parent=0 // pred_check_branch
    %14 = sbr.rel (0) target = $region5
  $region4: #{tpu_custom_call.1} parent=0 // pred_region
    _
  $region5: #{tpu_custom_call.1} parent=0 // pred_fallthru
    _
  // Predicated region
  $region6: #{tpu_custom_call.1} parent=0 // pred_check
    _
  $region7: #{tpu_custom_call.1} parent=0 // pred_check_branch
    %16 = sbr.rel (0) target = $region9
  $region8: #{tpu_custom_call.1} parent=0 // pred_region
    _
  $region9: #{tpu_custom_call.1} parent=0 // pred_fallthru
    _
  // Predicated region
  $region10: #{tpu_custom_call.1} parent=0 // pred_check
    _
  $region11: #{tpu_custom_call.1} parent=0 // pred_check_branch
    %18 = sbr.rel (0) target = $region13
  $region12: #{tpu_custom_call.1} parent=0 // pred_region
    _
  $region13: #{tpu_custom_call.1} parent=0 // pred_fallthru
    _
  // Predicated region
  $region14: #{tpu_custom_call.1} parent=0 // pred_check
    _
  $region15: #{tpu_custom_call.1} parent=0 // pred_check_branch
    %20 = sbr.rel (0) target = $region17
  $region16: #{tpu_custom_call.1} parent=0 // pred_region
    _
  $region17: #{tpu_custom_call.1} parent=0 // pred_fallthru
    _
  // Predicated region
  $region18: #{tpu_custom_call.1} parent=0 // pred_check
    _
  $region19: #{tpu_custom_call.1} parent=0 // pred_check_branch
    %22 = sbr.rel (0) target = $region21
  $region20: #{tpu_custom_call.1} parent=0 // pred_region
    _
  $region21: #{tpu_custom_call.1} parent=0 // pred_fallthru
    _
  // Predicated region
  $region22: #{tpu_custom_call.1} parent=0 // pred_check
    _
  $region23: #{tpu_custom_call.1} parent=0 // pred_check_branch
    %24 = sbr.rel (0) target = $region25
  $region24: #{tpu_custom_call.1} parent=0 // pred_region
    _
  $region25: #{tpu_custom_call.1} parent=0 // pred_fallthru
    _
  // Predicated region
  $region26: #{tpu_custom_call.1} parent=0 // pred_check
    _
  $region27: #{tpu_custom_call.1} parent=0 // pred_check_branch
    %26 = sbr.rel (0) target = $region29
  $region28: #{tpu_custom_call.1} parent=0 // pred_region
    _
  $region29: #{tpu_custom_call.1} parent=0 // pred_fallthru
    _
  %v28 = vld [vmem:[%s0] sm:$0xf]
  %v29 = vld [vmem:[%s0 + $0x4] sm:$0xf]
  %v30 = vld [vmem:[%s1] sm:$0xf]
  %v31 = vld [vmem:[%s1 + $0x4] sm:$0xf]
  %v32 = vld [vmem:[%s1 + $0x8] sm:$0x3]
  %v33 = vld [vmem:[%s2] sm:$0x1]
  %v35 = vperm.slane %v33, 0
  %v39 = vunpack.c.l.b16 %v28
  %v40 = vunpack.c.l.b16 %v29
  %v41 = vpack.c.b16 %v40, %v39
  %v45 = vunpack.c.l.b16 %v30
  %v46 = vunpack.c.l.b16 %v31
  %v47 = vunpack.c.l.b16 %v32
  %v48 = vpack.c.b16 %v46, %v45
  %v49 = vpack.c.b16 %v47, %v47
  %vm51 = vcmask 162816
  %v53 = vsel %vm51, %v41, 0
  %vm55 = vcmask 1041408
  %v57 = vsel %vm55, %v49, 0
  %59 = vmatpush.bf16.msra.mxu0 0
  %60 = vmatpush.bf16.msra.mxu0 0
  %61 = vmatpush.bf16.msra.mxu0 0
  %62 = vmatpush.bf16.msra.mxu0 0
  %63 = vmatpush.bf16.msra.mxu0 0
  %64 = vmatpush.bf16.msra.mxu0 0
  %65 = vmatpush.bf16.msra.mxu0 %v57
  %66 = vmatpush.bf16.msra.mxu0 %v48
  %67 = vmatmul.bf16.gmra.mxu0 %v53
  %v68 = vpop.f32.mrf.mxu0
  %v69 = vadd.f32 %v35, %v68
  %v70 = vpop.f32.mrf.mxu0
  %v71 = vadd.f32 %v35, %v70
  %72 = vdwg.mxu0
  %vm73 = vcmp.gt.f32.partialorder %v69, 0.0
  %vm74 = vcmp.gt.f32.partialorder %v71, 0.0
  %v75 = vmul.f32 %v69, 0.2
  %v76 = vmul.f32 %v71, 0.2
  %v77 = vsel %vm73, %v69, %v75
  %v78 = vsel %vm74, %v71, %v76
  %v79 = vpack.c.bf16 %v78, %v77
  %v80 = vld [vmem:[%s3] sm:$0xf]
  %v81 = vld [vmem:[%s3 + $0x4] sm:$0xf]
  %v82 = vld [vmem:[%s3 + $0x8] sm:$0xf]
  %v83 = vld [vmem:[%s3 + $0xc] sm:$0xf]
  %v84 = vld [vmem:[%s3 + $0x10] sm:$0xf]
  %v85 = vld [vmem:[%s3 + $0x14] sm:$0xf]
  %v86 = vld [vmem:[%s3 + $0x18] sm:$0xf]
  %v87 = vld [vmem:[%s3 + $0x1c] sm:$0xf]
  %v88 = vld [vmem:[%s4] sm:$0x1]
  %v90 = vperm.slane %v88, 0
  %v100 = vunpack.c.l.b16 %v80
  %v101 = vunpack.c.l.b16 %v81
  %v102 = vunpack.c.l.b16 %v82
  %v103 = vunpack.c.l.b16 %v83
  %v104 = vunpack.c.l.b16 %v84
  %v105 = vunpack.c.l.b16 %v85
  %v106 = vunpack.c.l.b16 %v86
  %v107 = vunpack.c.l.b16 %v87
  %v108 = vpack.c.b16 %v101, %v100
  %v109 = vpack.c.b16 %v103, %v102
  %v110 = vpack.c.b16 %v105, %v104
  %v111 = vpack.c.b16 %v107, %v106
  %vm116 = vcmask 523264
  %v118 = vsel %vm116, %v79, 0
  %120 = vmatpush.bf16.msra.mxu0 0
  %121 = vmatpush.bf16.msra.mxu0 0
  %122 = vmatpush.bf16.msra.mxu0 0
  %123 = vmatpush.bf16.msra.mxu0 0
  %124 = vmatpush.bf16.msra.mxu0 %v111
  %125 = vmatpush.bf16.msra.mxu0 %v110
  %126 = vmatpush.bf16.msra.mxu0 %v109
  %127 = vmatpush.bf16.msra.mxu0 %v108
  %128 = vmatmul.bf16.gmra.mxu0 %v118
  %v129 = vpop.f32.mrf.mxu0
  %v130 = vadd.f32 %v90, %v129
  %v131 = vpop.f32.mrf.mxu0
  %v132 = vadd.f32 %v90, %v131
  %133 = vdwg.mxu0
  %vm134 = vcmp.gt.f32.partialorder %v130, 0.0
  %vm135 = vcmp.gt.f32.partialorder %v132, 0.0
  %v136 = vmul.f32 %v130, 0.2
  %v137 = vmul.f32 %v132, 0.2
  %v138 = vsel %vm134, %v130, %v136
  %v139 = vsel %vm135, %v132, %v137
  %v140 = vld [vmem:[%s5] sm:$0x1]
  %v142 = vperm.slane %v140, 0
  %v144 = vmul.f32 %v138, %v142
  %v145 = vmul.f32 %v139, %v142
  %vm146 = vcmask 261120
  %v147 = vsel %vm146, %v144, 0.0
  %148 = vadd.xlane.f32.xlu0 %v147
  %v149 = vpop.xlane.xlu0 %148
  %v150 = vsel %vm146, %v145, 0.0
  %151 = vadd.xlane.f32.xlu0 %v150
  %v152 = vpop.xlane.xlu0 %151
  %s153 = sld [smem:[#allocation2]]
  %v154 = vstv %s153
  %v155 = vadd.f32 %v149, %v154
  %v156 = vadd.f32 %v152, %v154
  %v157 = vxor.u32 %v155, 2147483648
  %v158 = vxor.u32 %v156, 2147483648
  %v159 = vmul.f32 %v157, 1.442695
  %v160 = vpow.pop %v159
  %v161 = vmul.f32 %v158, 1.442695
  %v162 = vpow.pop %v161
  %v163 = vadd.f32 %v160, 1.0
  %v164 = vadd.f32 %v162, 1.0
  %v165 = vrcp.pop %v163
  %v166 = vmul.f32 %v163, %v165
  %v167 = vsub.f32 1.0, %v166
  %v168 = vmul.f32 %v165, %v167
  %v169 = vadd.f32 %v165, %v168
  %vm170 = vweird.f32 %v163
  %vm171 = vweird.f32 %v165
  %vm172 = vmor %vm170, %vm171
  %v173 = vsel %vm172, %v165, %v169
  %v174 = vand.u32 2147483647, %v163
  %vm175 = vcmp.eq.f32.partialorder %v174, 8.507059e+37
  %v176 = vand.u32 %v163, 2147483648
  %v177 = vor.u32 1.1754944e-38, %v176
  %v178 = vsel %vm175, %v177, %v173
  %v179 = vmul.f32 1.0, %v178
  %v180 = vrcp.pop %v164
  %v181 = vmul.f32 %v164, %v180
  %v182 = vsub.f32 1.0, %v181
  %v183 = vmul.f32 %v180, %v182
  %v184 = vadd.f32 %v180, %v183
  %vm185 = vweird.f32 %v164
  %vm186 = vweird.f32 %v180
  %vm187 = vmor %vm185, %vm186
  %v188 = vsel %vm187, %v180, %v184
  %v189 = vand.u32 2147483647, %v164
  %vm190 = vcmp.eq.f32.partialorder %v189, 8.507059e+37
  %v191 = vand.u32 %v164, 2147483648
  %v192 = vor.u32 1.1754944e-38, %v191
  %v193 = vsel %vm190, %v192, %v188
  %v194 = vmul.f32 1.0, %v193
  %vm195 = vcmask 7168
  %196 = vst.msk [vmem:[%s7] sm:$0xff] %vm195, %v179
  %197 = vst.msk [vmem:[%s7 + $0x8] sm:$0xff] %vm195, %v194
  // Predicated region
  $region30: #{tpu_custom_call.1} parent=0 // pred_check
    _
  $region31: #{tpu_custom_call.1} parent=0 // pred_check_branch
    %199 = sbr.rel (0) target = $region33
  $region32: #{tpu_custom_call.1} parent=0 // pred_region
    _
  $region33: #{tpu_custom_call.1} parent=0 // pred_fallthru
    _
  // Predicated region
  $region34: #{tpu_custom_call.1} parent=0 // pred_check
    _
  $region35: #{tpu_custom_call.1} parent=0 // pred_check_branch
    %201 = sbr.rel (0) target = $region37
  $region36: #{tpu_custom_call.1} parent=0 // pred_region
    _
  $region37: #{tpu_custom_call.1} parent=0 // pred_fallthru
    _

</llo_original>
